<compile_context>
chip_gen: v5e
topology: v5e:2x2
jax: 0.10.0
libtpu: 0.0.40
codegen_flags: <defaults>
</compile_context>

<pallas_src>
import functools

import numpy as np

import jax
import jax.numpy as jnp
from jax import lax
from jax.experimental import pallas as pl
from jax.experimental.pallas import tpu as pltpu


# ----------------------------- Pallas kernel ---------------------------------

def _make_mlp_kernel(n_mid_layers, emb_offsets, total_card, n_cont, tile_b):
    """Fused kernel:
         feat = [one-hot(emb) | x_cont | 1]            (built in-kernel, f32)
         h    = ReLU(feat @ W1_full)                   (b1 folded as last row)
         h    = ReLU(h @ W_i + b_i)  for each mid layer
         out  = h @ W_out + b_out
       All eval-mode BN affines are pre-folded into the weights on the host."""

    k1 = total_card + n_cont + 1  # combined categorical space + cont lanes + bias lane

    def kernel(x_cat_ref, x_cont_ref, w1_ref, *rest):
        out_ref = rest[-1]
        x_cat = x_cat_ref[...]                       # (TB, n_cat) int32
        x_cont = x_cont_ref[...]                     # (TB, n_cont) f32

        # Build the combined feature block in f32 (safe on all generations),
        # single cast to bf16 feeding the MXU.
        iota = lax.broadcasted_iota(jnp.int32, (tile_b, k1), 1)
        feat = jnp.zeros((tile_b, k1), jnp.float32)
        for i, off in enumerate(emb_offsets):        # static python loop (n_cat small)
            feat = feat + (iota == (x_cat[:, i:i + 1] + off)).astype(jnp.float32)
        for j in range(n_cont):                      # scatter cont features into lanes
            feat = feat + jnp.where(iota == total_card + j, x_cont[:, j:j + 1], 0.0)
        feat = feat + (iota == (k1 - 1)).astype(jnp.float32)   # constant-1 bias lane

        h = jnp.dot(feat.astype(jnp.bfloat16), w1_ref[...],
                    preferred_element_type=jnp.float32)
        h = jnp.maximum(h, 0.0)                      # ReLU (f32 epilogue)

        idx = 0
        for _ in range(n_mid_layers):
            w = rest[idx][...]
            b = rest[idx + 1][...]
            h = jnp.dot(h.astype(jnp.bfloat16), w,
                        preferred_element_type=jnp.float32) + b
            h = jnp.maximum(h, 0.0)
            idx += 2

        w_out = rest[idx][...]
        b_out = rest[idx + 1][...]
        out_ref[...] = (jnp.dot(h.astype(jnp.bfloat16), w_out,
                                preferred_element_type=jnp.float32)
                        + b_out).astype(out_ref.dtype)

    return kernel


def _pick_tile_b(B):
    """Right-size the batch tile: no wasteful padding for small B, >=2 grid steps
    (and amortized per-step overhead) for large B."""
    rup8 = -(-B // 8) * 8
    if rup8 <= 256:
        return max(8, rup8)
    return 512 if B >= 1024 else 256


def mlp_forward_pallas(x_cat, x_cont, folded, *, tile_b=None):
    """x_cat: (B, n_cat) int32, x_cont: (B, n_cont) f32. Returns (B, output_size) f32."""
    B, n_cat = x_cat.shape
    n_cont = x_cont.shape[1]
    if tile_b is None:
        tile_b = _pick_tile_b(B)

    grid = pl.cdiv(B, tile_b)
    output_size = folded["w_out"].shape[1]

    weight_arrays = [folded["w1"]]
    for w, b in folded["mids"]:
        weight_arrays += [w, b]
    weight_arrays += [folded["w_out"], folded["b_out"]]

    in_specs = [
        pl.BlockSpec((tile_b, n_cat), lambda i: (i, 0)),     # batch-tiled
        pl.BlockSpec((tile_b, n_cont), lambda i: (i, 0)),    # batch-tiled
    ] + [pl.BlockSpec(a.shape, lambda i: (0, 0)) for a in weight_arrays]  # VMEM resident

    kernel = _make_mlp_kernel(len(folded["mids"]), folded["offsets"],
                              folded["total_card"], n_cont, tile_b)

    return pl.pallas_call(
        kernel,
        out_shape=jax.ShapeDtypeStruct((B, output_size), jnp.float32),
        grid=(grid,),
        in_specs=in_specs,
        out_specs=pl.BlockSpec((tile_b, output_size), lambda i: (i, 0)),
        compiler_params=pltpu.CompilerParams(
            dimension_semantics=("parallel",)),
    )(x_cat.astype(jnp.int32), x_cont.astype(jnp.float32), *weight_arrays)


# ----------------------- Parameter init & host-side folding -------------------

def init_params(key, emb_sizes, n_cont, output_size, layers):
    """Deterministic synthetic parameter init (shapes mirror the PyTorch module)."""
    params = {}
    keys = iter(jax.random.split(key, 64))

    params["emb_tables"] = [
        jax.random.normal(next(keys), (ni, nf), jnp.float32) * 0.1
        for (ni, nf) in emb_sizes
    ]

    params["bn_cont"] = dict(
        gamma=1.0 + 0.1 * jax.random.normal(next(keys), (n_cont,), jnp.float32),
        beta=0.1 * jax.random.normal(next(keys), (n_cont,), jnp.float32),
        mean=0.1 * jax.random.normal(next(keys), (n_cont,), jnp.float32),
        var=jnp.abs(jax.random.normal(next(keys), (n_cont,), jnp.float32)) + 0.5,
        eps=1e-5,
    )

    n_embs = sum(nf for _, nf in emb_sizes)
    n_in = n_embs + n_cont

    hidden = []
    for n_out in layers:
        bound = 1.0 / float(np.sqrt(n_in))
        w = jax.random.uniform(next(keys), (n_in, n_out), jnp.float32, -bound, bound)
        b = jax.random.uniform(next(keys), (n_out,), jnp.float32, -bound, bound)
        bn = dict(
            gamma=1.0 + 0.1 * jax.random.normal(next(keys), (n_out,), jnp.float32),
            beta=0.1 * jax.random.normal(next(keys), (n_out,), jnp.float32),
            mean=0.1 * jax.random.normal(next(keys), (n_out,), jnp.float32),
            var=jnp.abs(jax.random.normal(next(keys), (n_out,), jnp.float32)) + 0.5,
            eps=1e-5,
        )
        hidden.append(dict(w=w, b=b, bn=bn))
        n_in = n_out
    params["hidden"] = hidden

    bound = 1.0 / float(np.sqrt(layers[-1]))
    params["out_w"] = jax.random.uniform(
        next(keys), (layers[-1], output_size), jnp.float32, -bound, bound)
    params["out_b"] = jax.random.uniform(
        next(keys), (output_size,), jnp.float32, -bound, bound)
    return params


def _fold_bn(bn):
    scale = bn["gamma"] / jnp.sqrt(bn["var"] + bn["eps"])
    shift = bn["beta"] - bn["mean"] * scale
    return scale, shift


def fold_params(params, emb_sizes, output_size):
    """Fold all eval-mode BN affines + embedding tables into the Linear weights.
    TODO(synk): folding is only valid in eval mode (dropout identity, BN running stats)."""
    cont_scale, cont_shift = _fold_bn(params["bn_cont"])

    h0 = params["hidden"][0]
    W1, b1 = h0["w"], h0["b"]
    n_embs = sum(nf for _, nf in emb_sizes)
    W1_emb = W1[:n_embs]                       # rows driven by embedding outputs
    W1_cont = W1[n_embs:]                      # rows driven by continuous features

    # Input BN (continuous columns) folded into W1's continuous rows / bias.
    w1c = cont_scale[:, None] * W1_cont
    b1f = b1 + cont_shift @ W1_cont

    # Embedding tables pre-multiplied into W1's embedding rows:
    #   x_emb @ W1_emb == onehot_combined @ M   (disjoint column ranges)
    m_blocks = []
    row = 0
    for tbl, (ni, nf) in zip(params["emb_tables"], emb_sizes):
        m_blocks.append(tbl @ W1_emb[row:row + nf])
        row += nf
    m = jnp.concatenate(m_blocks, axis=0)      # (sum cardinalities, L1)

    cards = [ni for ni, _ in emb_sizes]
    offsets = tuple(int(o) for o in np.cumsum([0] + cards[:-1]))
    total_card = int(sum(cards))

    # Single first-layer matrix: [M ; W1_cont(scaled) ; b1] — the bias row is
    # activated by a constant-1 feature lane appended inside the kernel.
    w1_full = jnp.concatenate([m, w1c, b1f[None, :]], axis=0).astype(jnp.bfloat16)

    # Each hidden layer's BN folds into the NEXT Linear.
    s_prev, t_prev = _fold_bn(h0["bn"])
    mids = []
    for layer in params["hidden"][1:]:
        W, b = layer["w"], layer["b"]
        mids.append(((s_prev[:, None] * W).astype(jnp.bfloat16),
                     (t_prev @ W + b)[None, :].astype(jnp.float32)))
        s_prev, t_prev = _fold_bn(layer["bn"])

    w_out = (s_prev[:, None] * params["out_w"]).astype(jnp.bfloat16)
    b_out = (t_prev @ params["out_w"] + params["out_b"])[None, :].astype(jnp.float32)

    return dict(
        w1=w1_full,
        mids=mids,
        w_out=w_out,
        b_out=b_out,
        offsets=offsets,
        total_card=total_card,
    )


def make_forward(params, emb_sizes, output_size, tile_b=None):
    """Fold parameters ONCE (hoisted out of the per-call path) and return a jitted
    forward(x_cat, x_cont) that only launches the fused Pallas kernel."""
    folded = fold_params(params, emb_sizes, output_size)
    folded = jax.block_until_ready(folded)          # materialize folded device arrays once

    @jax.jit
    def forward(x_cat, x_cont):
        return mlp_forward_pallas(x_cat, x_cont, folded, tile_b=tile_b)

    return forward, folded


# ------------------------------- References -----------------------------------

def model_forward_reference(params, x_cat, x_cont):
    """Pure-JAX f32 reference matching the PyTorch module in eval mode."""
    embs = [jnp.take(tbl, x_cat[:, i], axis=0)
            for i, tbl in enumerate(params["emb_tables"])]
    x = jnp.concatenate(embs, axis=1)
    cs, ct = _fold_bn(params["bn_cont"])
    xc = x_cont * cs[None, :] + ct[None, :]
    h = jnp.concatenate([x, xc], axis=1)
    for layer in params["hidden"]:
        h = jnp.maximum(h @ layer["w"] + layer["b"][None, :], 0.0)
        s, t = _fold_bn(layer["bn"])
        h = h * s[None, :] + t[None, :]
    return h @ params["out_w"] + params["out_b"][None, :]


def folded_reference(folded, x_cat, x_cont):
    """Plain-JAX emulation of the exact kernel math (bf16 matmul inputs, f32 acc)."""
    B = x_cat.shape[0]
    offs = jnp.array(folded["offsets"], jnp.int32)
    gidx = x_cat.astype(jnp.int32) + offs[None, :]
    onehot = jax.nn.one_hot(gidx, folded["total_card"], dtype=jnp.float32).sum(axis=1)
    feat = jnp.concatenate(
        [onehot, x_cont.astype(jnp.float32), jnp.ones((B, 1), jnp.float32)], axis=1)
    h = jnp.dot(feat.astype(jnp.bfloat16), folded["w1"],
                preferred_element_type=jnp.float32)
    h = jnp.maximum(h, 0.0)
    for w, b in folded["mids"]:
        h = jnp.maximum(jnp.dot(h.astype(jnp.bfloat16), w,
                                preferred_element_type=jnp.float32) + b, 0.0)
    return jnp.dot(h.astype(jnp.bfloat16), folded["w_out"],
                   preferred_element_type=jnp.float32) + folded["b_out"]


# ---------------------------------- main --------------------------------------

if __name__ == "__main__":
    emb_sizes = [(24, 12), (7, 4), (2, 1)]   # -> n_embs = 17
    n_cont = 4
    output_size = 1
    layers = [32, 16]
    B = 8

    key = jax.random.PRNGKey(0)
    k_par, k_cat, k_cont = jax.random.split(key, 3)

    params = init_params(k_par, emb_sizes, n_cont, output_size, layers)

    cat_cols = []
    for i, (ni, _) in enumerate(emb_sizes):
        cat_cols.append(jax.random.randint(jax.random.fold_in(k_cat, i),
                                           (B, 1), 0, ni, dtype=jnp.int32))
    x_cat = jnp.concatenate(cat_cols, axis=1)             # (B, 3) int32
    x_cont = jax.random.normal(k_cont, (B, n_cont), jnp.float32)

    # Fold once, reuse the jitted kernel-only forward for every call.
    forward, folded = make_forward(params, emb_sizes, output_size)

    out = jax.block_until_ready(forward(x_cat, x_cont))   # compiles + runs
    out = jax.block_until_ready(forward(x_cat, x_cont))   # steady-state call path
    assert out.shape == (B, output_size), out.shape

    # (1) Tight check vs a plain-JAX emulation of the exact kernel math.
    ref_folded = jax.block_until_ready(folded_reference(folded, x_cat, x_cont))
    assert jnp.allclose(out, ref_folded, atol=2e-3, rtol=2e-3), (out, ref_folded)

    # (2) Loose check vs the f32 module semantics (bf16 matmul inputs shift
    #     results at the ~1e-3..1e-2 level, as expected).
    ref = jax.block_until_ready(model_forward_reference(params, x_cat, x_cont))
    assert jnp.allclose(out, ref, atol=5e-2, rtol=5e-2), (out, ref)

    print("KERNEL_OK")
</pallas_src>

<mosaic_0001>
module attributes {stable_mosaic.version = 11 : i64} {
  func.func @kernel(%arg0: i32, %arg1: memref<8x3xi32, #tpu.memory_space<vmem>>, %arg2: memref<8x4xf32, #tpu.memory_space<vmem>>, %arg3: memref<38x32xbf16, #tpu.memory_space<vmem>>, %arg4: memref<32x16xbf16, #tpu.memory_space<vmem>>, %arg5: memref<1x16xf32, #tpu.memory_space<vmem>>, %arg6: memref<16x1xbf16, #tpu.memory_space<vmem>>, %arg7: memref<1x1xf32, #tpu.memory_space<vmem>>, %arg8: memref<8x1xf32, #tpu.memory_space<vmem>>) attributes {dimension_semantics = [#tpu.dimension_semantics<parallel>], iteration_bounds = array<i64: 1>, scalar_prefetch = 0 : i64, scratch_operands = 0 : i64, tpu.core_type = #tpu.core_type<tc>, window_params = [{transform_indices = @transform_0, window_bounds = array<i64: 8, 3>}, {transform_indices = @transform_1, window_bounds = array<i64: 8, 4>}, {pipeline_mode = #tpu.pipeline_mode<synchronous>, transform_indices = @transform_2, window_bounds = array<i64: 38, 32>}, {pipeline_mode = #tpu.pipeline_mode<synchronous>, transform_indices = @transform_3, window_bounds = array<i64: 32, 16>}, {pipeline_mode = #tpu.pipeline_mode<synchronous>, transform_indices = @transform_4, window_bounds = array<i64: 1, 16>}, {pipeline_mode = #tpu.pipeline_mode<synchronous>, transform_indices = @transform_5, window_bounds = array<i64: 16, 1>}, {pipeline_mode = #tpu.pipeline_mode<synchronous>, transform_indices = @transform_6, window_bounds = array<i64: 1, 1>}, {transform_indices = @transform_7, window_bounds = array<i64: 8, 1>}]} {
    %c0 = arith.constant 0 : index
    %c0_0 = arith.constant 0 : index
    %0 = vector.load %arg1[%c0, %c0_0] : memref<8x3xi32, #tpu.memory_space<vmem>>, vector<8x3xi32>
    %c0_1 = arith.constant 0 : index
    %c0_2 = arith.constant 0 : index
    %1 = vector.load %arg2[%c0_1, %c0_2] : memref<8x4xf32, #tpu.memory_space<vmem>>, vector<8x4xf32>
    %2 = tpu.iota {dimensions = array<i32: 1>} : vector<8x38xi32>
    %cst = arith.constant 0.000000e+00 : f32
    %3 = vector.broadcast %cst : f32 to vector<8x38xf32>
    %4 = vector.extract_strided_slice %0 {offsets = [0, 0], sizes = [8, 1], strides = [1, 1]} : vector<8x3xi32> to vector<8x1xi32>
    %c0_i32 = arith.constant 0 : i32
    %5 = vector.broadcast %c0_i32 : i32 to vector<8x1xi32>
    %6 = arith.addi %4, %5 : vector<8x1xi32>
    %7 = vector.broadcast %6 : vector<8x1xi32> to vector<8x38xi32>
    %8 = arith.cmpi eq, %2, %7 : vector<8x38xi32>
    %9 = arith.extui %8 : vector<8x38xi1> to vector<8x38xi32>
    %10 = arith.sitofp %9 : vector<8x38xi32> to vector<8x38xf32>
    %11 = arith.addf %3, %10 : vector<8x38xf32>
    %12 = vector.extract_strided_slice %0 {offsets = [0, 1], sizes = [8, 1], strides = [1, 1]} : vector<8x3xi32> to vector<8x1xi32>
    %c24_i32 = arith.constant 24 : i32
    %13 = vector.broadcast %c24_i32 : i32 to vector<8x1xi32>
    %14 = arith.addi %12, %13 : vector<8x1xi32>
    %15 = vector.broadcast %14 : vector<8x1xi32> to vector<8x38xi32>
    %16 = arith.cmpi eq, %2, %15 : vector<8x38xi32>
    %17 = arith.extui %16 : vector<8x38xi1> to vector<8x38xi32>
    %18 = arith.sitofp %17 : vector<8x38xi32> to vector<8x38xf32>
    %19 = arith.addf %11, %18 : vector<8x38xf32>
    %20 = vector.extract_strided_slice %0 {offsets = [0, 2], sizes = [8, 1], strides = [1, 1]} : vector<8x3xi32> to vector<8x1xi32>
    %c31_i32 = arith.constant 31 : i32
    %21 = vector.broadcast %c31_i32 : i32 to vector<8x1xi32>
    %22 = arith.addi %20, %21 : vector<8x1xi32>
    %23 = vector.broadcast %22 : vector<8x1xi32> to vector<8x38xi32>
    %24 = arith.cmpi eq, %2, %23 : vector<8x38xi32>
    %25 = arith.extui %24 : vector<8x38xi1> to vector<8x38xi32>
    %26 = arith.sitofp %25 : vector<8x38xi32> to vector<8x38xf32>
    %27 = arith.addf %19, %26 : vector<8x38xf32>
    %c33_i32 = arith.constant 33 : i32
    %28 = vector.broadcast %c33_i32 : i32 to vector<8x38xi32>
    %29 = arith.cmpi eq, %2, %28 : vector<8x38xi32>
    %30 = vector.extract_strided_slice %1 {offsets = [0, 0], sizes = [8, 1], strides = [1, 1]} : vector<8x4xf32> to vector<8x1xf32>
    %cst_3 = arith.constant 0.000000e+00 : f32
    %31 = vector.shape_cast %30 : vector<8x1xf32> to vector<8x1xf32>
    %32 = vector.broadcast %31 : vector<8x1xf32> to vector<8x38xf32>
    %33 = vector.broadcast %cst_3 : f32 to vector<8x38xf32>
    %34 = arith.select %29, %32, %33 : vector<8x38xi1>, vector<8x38xf32>
    %35 = arith.addf %27, %34 : vector<8x38xf32>
    %c34_i32 = arith.constant 34 : i32
    %36 = vector.broadcast %c34_i32 : i32 to vector<8x38xi32>
    %37 = arith.cmpi eq, %2, %36 : vector<8x38xi32>
    %38 = vector.extract_strided_slice %1 {offsets = [0, 1], sizes = [8, 1], strides = [1, 1]} : vector<8x4xf32> to vector<8x1xf32>
    %cst_4 = arith.constant 0.000000e+00 : f32
    %39 = vector.shape_cast %38 : vector<8x1xf32> to vector<8x1xf32>
    %40 = vector.broadcast %39 : vector<8x1xf32> to vector<8x38xf32>
    %41 = vector.broadcast %cst_4 : f32 to vector<8x38xf32>
    %42 = arith.select %37, %40, %41 : vector<8x38xi1>, vector<8x38xf32>
    %43 = arith.addf %35, %42 : vector<8x38xf32>
    %c35_i32 = arith.constant 35 : i32
    %44 = vector.broadcast %c35_i32 : i32 to vector<8x38xi32>
    %45 = arith.cmpi eq, %2, %44 : vector<8x38xi32>
    %46 = vector.extract_strided_slice %1 {offsets = [0, 2], sizes = [8, 1], strides = [1, 1]} : vector<8x4xf32> to vector<8x1xf32>
    %cst_5 = arith.constant 0.000000e+00 : f32
    %47 = vector.shape_cast %46 : vector<8x1xf32> to vector<8x1xf32>
    %48 = vector.broadcast %47 : vector<8x1xf32> to vector<8x38xf32>
    %49 = vector.broadcast %cst_5 : f32 to vector<8x38xf32>
    %50 = arith.select %45, %48, %49 : vector<8x38xi1>, vector<8x38xf32>
    %51 = arith.addf %43, %50 : vector<8x38xf32>
    %c36_i32 = arith.constant 36 : i32
    %52 = vector.broadcast %c36_i32 : i32 to vector<8x38xi32>
    %53 = arith.cmpi eq, %2, %52 : vector<8x38xi32>
    %54 = vector.extract_strided_slice %1 {offsets = [0, 3], sizes = [8, 1], strides = [1, 1]} : vector<8x4xf32> to vector<8x1xf32>
    %cst_6 = arith.constant 0.000000e+00 : f32
    %55 = vector.shape_cast %54 : vector<8x1xf32> to vector<8x1xf32>
    %56 = vector.broadcast %55 : vector<8x1xf32> to vector<8x38xf32>
    %57 = vector.broadcast %cst_6 : f32 to vector<8x38xf32>
    %58 = arith.select %53, %56, %57 : vector<8x38xi1>, vector<8x38xf32>
    %59 = arith.addf %51, %58 : vector<8x38xf32>
    %c37_i32 = arith.constant 37 : i32
    %60 = vector.broadcast %c37_i32 : i32 to vector<8x38xi32>
    %61 = arith.cmpi eq, %2, %60 : vector<8x38xi32>
    %62 = arith.extui %61 : vector<8x38xi1> to vector<8x38xi32>
    %63 = arith.sitofp %62 : vector<8x38xi32> to vector<8x38xf32>
    %64 = arith.addf %59, %63 : vector<8x38xf32>
    %65 = arith.truncf %64 : vector<8x38xf32> to vector<8x38xbf16>
    %c0_7 = arith.constant 0 : index
    %c0_8 = arith.constant 0 : index
    %66 = vector.load %arg3[%c0_7, %c0_8] : memref<38x32xbf16, #tpu.memory_space<vmem>>, vector<38x32xbf16>
    %cst_9 = arith.constant dense<0.000000e+00> : vector<8x32xf32>
    %67 = tpu.matmul %65, %66, %cst_9 {dimension_numbers = #tpu.dot_dimension_numbers<[1], [0], [0], [1], [0, 0, 1, 1], [], []>} : vector<8x38xbf16>, vector<38x32xbf16>, vector<8x32xf32> -> vector<8x32xf32>
    %cst_10 = arith.constant 0.000000e+00 : f32
    %68 = vector.broadcast %cst_10 : f32 to vector<8x32xf32>
    %69 = arith.maximumf %67, %68 : vector<8x32xf32>
    %c0_11 = arith.constant 0 : index
    %c0_12 = arith.constant 0 : index
    %70 = vector.load %arg4[%c0_11, %c0_12] : memref<32x16xbf16, #tpu.memory_space<vmem>>, vector<32x16xbf16>
    %c0_13 = arith.constant 0 : index
    %c0_14 = arith.constant 0 : index
    %71 = vector.load %arg5[%c0_13, %c0_14] : memref<1x16xf32, #tpu.memory_space<vmem>>, vector<1x16xf32>
    %72 = arith.truncf %69 : vector<8x32xf32> to vector<8x32xbf16>
    %cst_15 = arith.constant dense<0.000000e+00> : vector<8x16xf32>
    %73 = tpu.matmul %72, %70, %cst_15 {dimension_numbers = #tpu.dot_dimension_numbers<[1], [0], [0], [1], [0, 0, 1, 1], [], []>} : vector<8x32xbf16>, vector<32x16xbf16>, vector<8x16xf32> -> vector<8x16xf32>
    %74 = vector.broadcast %71 : vector<1x16xf32> to vector<8x16xf32>
    %75 = arith.addf %73, %74 : vector<8x16xf32>
    %cst_16 = arith.constant 0.000000e+00 : f32
    %76 = vector.broadcast %cst_16 : f32 to vector<8x16xf32>
    %77 = arith.maximumf %75, %76 : vector<8x16xf32>
    %c0_17 = arith.constant 0 : index
    %c0_18 = arith.constant 0 : index
    %78 = vector.load %arg6[%c0_17, %c0_18] : memref<16x1xbf16, #tpu.memory_space<vmem>>, vector<16x1xbf16>
    %c0_19 = arith.constant 0 : index
    %c0_20 = arith.constant 0 : index
    %79 = vector.load %arg7[%c0_19, %c0_20] : memref<1x1xf32, #tpu.memory_space<vmem>>, vector<1x1xf32>
    %80 = arith.truncf %77 : vector<8x16xf32> to vector<8x16xbf16>
    %cst_21 = arith.constant dense<0.000000e+00> : vector<8x1xf32>
    %81 = tpu.matmul %80, %78, %cst_21 {dimension_numbers = #tpu.dot_dimension_numbers<[1], [0], [0], [1], [0, 0, 1, 1], [], []>} : vector<8x16xbf16>, vector<16x1xbf16>, vector<8x1xf32> -> vector<8x1xf32>
    %82 = vector.broadcast %79 : vector<1x1xf32> to vector<8x1xf32>
    %83 = arith.addf %81, %82 : vector<8x1xf32>
    %c0_22 = arith.constant 0 : index
    %c0_23 = arith.constant 0 : index
    %84 = vector.load %arg8[%c0_22, %c0_23] : memref<8x1xf32, #tpu.memory_space<vmem>>, vector<8x1xf32>
    tpu.vector_store %arg8[%c0_22, %c0_23], %83 {strides = array<i32>} : memref<8x1xf32, #tpu.memory_space<vmem>>, vector<8x1xf32>,
    return
  }
  func.func @transform_0(%arg0: i32) -> (i32, i32) {
    %c0_i32 = arith.constant 0 : i32
    %c0_i32_0 = arith.constant 0 : i32
    return %arg0, %c0_i32 : i32, i32
  }
  func.func @transform_1(%arg0: i32) -> (i32, i32) {
    %c0_i32 = arith.constant 0 : i32
    %c0_i32_0 = arith.constant 0 : i32
    return %arg0, %c0_i32 : i32, i32
  }
  func.func @transform_2(%arg0: i32) -> (i32, i32) {
    %c0_i32 = arith.constant 0 : i32
    %c0_i32_0 = arith.constant 0 : i32
    %c0_i32_1 = arith.constant 0 : i32
    return %c0_i32, %c0_i32_0 : i32, i32
  }
  func.func @transform_3(%arg0: i32) -> (i32, i32) {
    %c0_i32 = arith.constant 0 : i32
    %c0_i32_0 = arith.constant 0 : i32
    %c0_i32_1 = arith.constant 0 : i32
    return %c0_i32, %c0_i32_0 : i32, i32
  }
  func.func @transform_4(%arg0: i32) -> (i32, i32) {
    %c0_i32 = arith.constant 0 : i32
    %c0_i32_0 = arith.constant 0 : i32
    %c0_i32_1 = arith.constant 0 : i32
    return %c0_i32, %c0_i32_0 : i32, i32
  }
  func.func @transform_5(%arg0: i32) -> (i32, i32) {
    %c0_i32 = arith.constant 0 : i32
    %c0_i32_0 = arith.constant 0 : i32
    %c0_i32_1 = arith.constant 0 : i32
    return %c0_i32, %c0_i32_0 : i32, i32
  }
  func.func @transform_6(%arg0: i32) -> (i32, i32) {
    %c0_i32 = arith.constant 0 : i32
    %c0_i32_0 = arith.constant 0 : i32
    %c0_i32_1 = arith.constant 0 : i32
    return %c0_i32, %c0_i32_0 : i32, i32
  }
  func.func @transform_7(%arg0: i32) -> (i32, i32) {
    %c0_i32 = arith.constant 0 : i32
    %c0_i32_0 = arith.constant 0 : i32
    return %arg0, %c0_i32 : i32, i32
  }
}

</mosaic_0001>

<llo_original>
// kernel: forward.1
$region0: #{forward.1}
  #allocation0 [shape = 'u32[]', space=smem, size = 0x4, offset = 0x4, fixed_abs, tag = 'smem constant byte address 0x4 - core index']
  #allocation1 [shape = 'u32[72,128]{1,0:T(1,128)}', space=vmem, size = 0x9000, scoped, tag = 'internal scratch']
  #allocation2 [shape = 'f32[1,1]{1,0:T(1,128)S(1)}', space=vmem, size = 0x200, scoped, tag = 'scoped memory for forward.1']
  %s0 = inlined_call_operand.vmem [shape: s32[8,3], index: 0, kind: input, shape index: {}]
  %s1 = inlined_call_operand.vmem [shape: f32[8,4], index: 1, kind: input, shape index: {}]
  %s2 = inlined_call_operand.hbm [shape: bf16[38,32], index: 2, kind: input, shape index: {}]
  %s3 = inlined_call_operand.vmem [shape: bf16[32,16], index: 3, kind: input, shape index: {}]
  %s4 = inlined_call_operand.hbm [shape: f32[1,16], index: 4, kind: input, shape index: {}]
  %s5 = inlined_call_operand.vmem [shape: bf16[16,1], index: 5, kind: input, shape index: {}]
  %s6 = inlined_call_operand.<no memory space> [shape: f32[1,1], index: 6, kind: input, shape index: {}]
  %s7 = inlined_call_operand.vmem [shape: f32[8,1], index: 7, kind: output, shape index: {}]
  %s8 = sld [smem:[#allocation0]]
  $region46: #{forward.1} parent=0
    _
  %s10 = ssub.s32 1, %s8
  %s11 = scalar_select 0, %s10, %s8
  %v12 = vstv %s6
  %13 = vst [vmem:[#allocation2] sm:$0x1] %v12
  $region1: #{forward.1} parent=0
    #allocation3 [shape = 'u8[10240]{0}', space=vmem, size = 0x2800, scoped, tag = 'input window, operand 2, single buffered']
    #allocation4 [shape = 's32[1]{0}', space=sflag, size = 0x4, scoped, tag = 'scoped memory for forward.1']
    #allocation5 [shape = 'u8[512]{0}', space=vmem, size = 0x400, scoped, tag = 'input window, operand 4, single buffered']
    #allocation6 [shape = 's32[1]{0}', space=sflag, size = 0x4, scoped, tag = 'scoped memory for forward.1']
    %14 = vsyncpa [#allocation4], 0
    %15 = vsyncpa [#allocation6], 0
    // Predicated region
    $region2: #{forward.1} parent=1 // pred_check
      _
    $region3: #{forward.1} parent=1 // pred_check_branch
      %17 = sbr.rel (0) target = $region5
    $region4: #{forward.1} parent=1 // pred_region
      _
    $region5: #{forward.1} parent=1 // pred_fallthru
      _
    // Predicated region
    $region6: #{forward.1} parent=1 // pred_check
      _
    $region7: #{forward.1} parent=1 // pred_check_branch
      %19 = sbr.rel (0) target = $region9
    $region8: #{forward.1} parent=1 // pred_region
      _
    $region9: #{forward.1} parent=1 // pred_fallthru
      _
    // Predicated region
    $region10: #{forward.1} parent=1 // pred_check
      _
    $region11: #{forward.1} parent=1 // pred_check_branch
      %21 = sbr.rel (0) target = $region13
    $region12: #{forward.1} parent=1 // pred_region
      %23 = vsyncadd [#allocation4], 0
      %s24 = sshll.u32 %s2, 4
      %s25 = int_to_ptr.hbm [resolvable:$true] %s24
      %s26 = sshll.u32 [#allocation3], 4
      %s27 = int_to_ptr.vmem [resolvable:$true] %s26
      %32 = dma.hbm_to_vmem [thread:$0]  %s25, 320, %s27, [#allocation4], 64, 64, 4
    $region13: #{forward.1} parent=1 // pred_fallthru
      _
    // Predicated region
    $region14: #{forward.1} parent=1 // pred_check
      _
    $region15: #{forward.1} parent=1 // pred_check_branch
      %34 = sbr.rel (0) target = $region17
    $region16: #{forward.1} parent=1 // pred_region
      _
    $region17: #{forward.1} parent=1 // pred_fallthru
      _
    // Predicated region
    $region18: #{forward.1} parent=1 // pred_check
      _
    $region19: #{forward.1} parent=1 // pred_check_branch
      %36 = sbr.rel (0) target = $region21
    $region20: #{forward.1} parent=1 // pred_region
      %38 = vsyncadd [#allocation6], 0
      %s40 = sshll.u32 %s4, 4
      %s41 = int_to_ptr.hbm [resolvable:$true] %s40
      %s42 = sshll.u32 [#allocation5], 4
      %s43 = int_to_ptr.vmem [resolvable:$true] %s42
      %45 = dma.hbm_to_vmem [thread:$0]  %s41, 16, %s43, [#allocation6]
    $region21: #{forward.1} parent=1 // pred_fallthru
      _
    // Predicated region
    $region22: #{forward.1} parent=1 // pred_check
      _
    $region23: #{forward.1} parent=1 // pred_check_branch
      %47 = sbr.rel (0) target = $region25
    $region24: #{forward.1} parent=1 // pred_region
      _
    $region25: #{forward.1} parent=1 // pred_fallthru
      _
    // Predicated region
    $region26: #{forward.1} parent=1 // pred_check
      _
    $region27: #{forward.1} parent=1 // pred_check_branch
      %49 = sbr.rel (0) target = $region29
    $region28: #{forward.1} parent=1 // pred_region
      _
    $region29: #{forward.1} parent=1 // pred_fallthru
      _
    // Predicated region
    $region30: #{forward.1} parent=1 // pred_check
      _
    $region31: #{forward.1} parent=1 // pred_check_branch
      %51 = sbr.rel (0) target = $region33
    $region32: #{forward.1} parent=1 // pred_region
      %53 = dma.done [#allocation4], 320
    $region33: #{forward.1} parent=1 // pred_fallthru
      _
    // Predicated region
    $region34: #{forward.1} parent=1 // pred_check
      _
    $region35: #{forward.1} parent=1 // pred_check_branch
      %55 = sbr.rel (0) target = $region37
    $region36: #{forward.1} parent=1 // pred_region
      %57 = dma.done [#allocation6], 16
    $region37: #{forward.1} parent=1 // pred_fallthru
      _
    %v59 = vld [vmem:[%s0] sm:$0xff]
    %v60 = vld [vmem:[%s1] sm:$0xff]
    %v61 = vlaneseq
    %v62 = vand.u32 %v61, 127
    %63 = vset.pattern.permute.xlu0 0
    %64 = vperm.xlu0 %63, %v59
    %v65 = vpop.permute.xlu0 %64
    %vm66 = vcmp.eq.s32.totalorder %v62, %v65
    %v67 = vsel %vm66, 1, 0
    %v68 = vcvt.s32.f32 %v67
    %v69 = vadd.f32 %v68, 0.0
    %v70 = vadd.s32 %v59, 24
    %71 = vset.pattern.permute.xlu0 1
    %72 = vperm.xlu0 %71, %v70
    %v73 = vpop.permute.xlu0 %72
    %vm74 = vcmp.eq.s32.totalorder %v62, %v73
    %v75 = vsel %vm74, 1, 0
    %v76 = vcvt.s32.f32 %v75
    %v77 = vadd.f32 %v69, %v76
    %v78 = vadd.s32 %v59, 31
    %79 = vset.pattern.permute.xlu0 2
    %80 = vperm.xlu0 %79, %v78
    %v81 = vpop.permute.xlu0 %80
    %vm82 = vcmp.eq.s32.totalorder %v62, %v81
    %v83 = vsel %vm82, 1, 0
    %v84 = vcvt.s32.f32 %v83
    %v85 = vadd.f32 %v77, %v84
    %vm86 = vcmp.eq.s32.totalorder %v62, 33
    %88 = vset.pattern.permute.xlu0 0
    %89 = vperm.xlu0 %88, %v60
    %v90 = vpop.permute.xlu0 %89
    %v92 = vsel %vm86, %v90, 0.0
    %v93 = vadd.f32 %v85, %v92
    %vm94 = vcmp.eq.s32.totalorder %v62, 34
    %95 = vset.pattern.permute.xlu0 1
    %96 = vperm.xlu0 %95, %v60
    %v97 = vpop.permute.xlu0 %96
    %v99 = vsel %vm94, %v97, 0.0
    %v100 = vadd.f32 %v93, %v99
    %vm101 = vcmp.eq.s32.totalorder %v62, 35
    %102 = vset.pattern.permute.xlu0 2
    %103 = vperm.xlu0 %102, %v60
    %v104 = vpop.permute.xlu0 %103
    %v106 = vsel %vm101, %v104, 0.0
    %v107 = vadd.f32 %v100, %v106
    %vm108 = vcmp.eq.s32.totalorder %v62, 36
    %109 = vset.pattern.permute.xlu0 3
    %110 = vperm.xlu0 %109, %v60
    %v111 = vpop.permute.xlu0 %110
    %v113 = vsel %vm108, %v111, 0.0
    %v114 = vadd.f32 %v107, %v113
    %vm115 = vcmp.eq.s32.totalorder %v62, 37
    %v116 = vsel %vm115, 1, 0
    %v117 = vcvt.s32.f32 %v116
    %v118 = vadd.f32 %v114, %v117
    %v119 = vpack.c.bf16 %v118, %v118
    %v120 = vld [vmem:[#allocation3] sm:$0xf]
    %v121 = vld [vmem:[#allocation3 + $0x4] sm:$0xf]
    %v122 = vld [vmem:[#allocation3 + $0x8] sm:$0xf]
    %v123 = vld [vmem:[#allocation3 + $0xc] sm:$0xf]
    %v124 = vld [vmem:[#allocation3 + $0x10] sm:$0x7]
    %v130 = vunpack.c.l.b16 %v120
    %v131 = vunpack.c.l.b16 %v121
    %v132 = vunpack.c.l.b16 %v122
    %v133 = vunpack.c.l.b16 %v123
    %v134 = vunpack.c.l.b16 %v124
    %v135 = vpack.c.b16 %v131, %v130
    %v136 = vpack.c.b16 %v133, %v132
    %v137 = vpack.c.b16 %v134, %v134
    %vm140 = vcmask 310272
    %v142 = vsel %vm140, %v119, 0
    %vm144 = vcmask 1042432
    %v146 = vsel %vm144, %v137, 0
    %148 = vmatpush.bf16.msra.mxu0 0
    %149 = vmatpush.bf16.msra.mxu0 0
    %150 = vmatpush.bf16.msra.mxu0 0
    %151 = vmatpush.bf16.msra.mxu0 0
    %152 = vmatpush.bf16.msra.mxu0 0
    %153 = vmatpush.bf16.msra.mxu0 %v146
    %154 = vmatpush.bf16.msra.mxu0 %v136
    %155 = vmatpush.bf16.msra.mxu0 %v135
    %156 = vmatmul.bf16.gmra.mxu0 %v142
    %v157 = vpop.f32.mrf.mxu0
    %v158 = vadd.f32 0.0, %v157
    %v159 = vpop.f32.mrf.mxu0
    %160 = vdwg.mxu0
    %v161 = vmax.f32 %v158, 0.0
    %v162 = vld [vmem:[%s3] sm:$0xf]
    %v163 = vld [vmem:[%s3 + $0x4] sm:$0xf]
    %v164 = vld [vmem:[%s3 + $0x8] sm:$0xf]
    %v165 = vld [vmem:[%s3 + $0xc] sm:$0xf]
    %v166 = vld [vmem:[#allocation5] sm:$0x1]
    %v167 = vpack.c.bf16 %v161, %v161
    %v169 = vperm.slane %v166, 0
    %v175 = vunpack.c.l.b16 %v162
    %v176 = vunpack.c.l.b16 %v163
    %v177 = vunpack.c.l.b16 %v164
    %v178 = vunpack.c.l.b16 %v165
    %v179 = vpack.c.b16 %v176, %v175
    %v180 = vpack.c.b16 %v178, %v177
    %vm183 = vcmask 261120
    %v185 = vsel %vm183, %v167, 0
    %187 = vmatpush.bf16.msra.mxu0 0
    %188 = vmatpush.bf16.msra.mxu0 0
    %189 = vmatpush.bf16.msra.mxu0 0
    %190 = vmatpush.bf16.msra.mxu0 0
    %191 = vmatpush.bf16.msra.mxu0 0
    %192 = vmatpush.bf16.msra.mxu0 0
    %193 = vmatpush.bf16.msra.mxu0 %v180
    %194 = vmatpush.bf16.msra.mxu0 %v179
    %195 = vmatmul.bf16.gmra.mxu0 %v185
    %v196 = vpop.f32.mrf.mxu0
    %v197 = vadd.f32 %v169, %v196
    %v198 = vpop.f32.mrf.mxu0
    %199 = vdwg.mxu0
    %v200 = vmax.f32 %v197, 0.0
    %v201 = vld [vmem:[%s5] sm:$0xf]
    %v202 = vld [vmem:[%s5 + $0x4] sm:$0xf]
    %v203 = vld [vmem:[#allocation2] sm:$0x1]
    %v204 = vpack.c.bf16 %v200, %v200
    %v206 = vperm.slane %v203, 0
    %v210 = vunpack.c.l.b16 %v201
    %v211 = vunpack.c.l.b16 %v202
    %v212 = vpack.c.b16 %v211, %v210
    %vm214 = vcmask 130048
    %v216 = vsel %vm214, %v204, 0
    %218 = vmatpush.bf16.msra.mxu0 0
    %219 = vmatpush.bf16.msra.mxu0 0
    %220 = vmatpush.bf16.msra.mxu0 0
    %221 = vmatpush.bf16.msra.mxu0 0
    %222 = vmatpush.bf16.msra.mxu0 0
    %223 = vmatpush.bf16.msra.mxu0 0
    %224 = vmatpush.bf16.msra.mxu0 0
    %225 = vmatpush.bf16.msra.mxu0 %v212
    %226 = vmatmul.bf16.gmra.mxu0 %v216
    %v227 = vpop.f32.mrf.mxu0
    %v228 = vadd.f32 %v206, %v227
    %v229 = vpop.f32.mrf.mxu0
    %230 = vdwg.mxu0
    %vm231 = vcmask 7168
    %232 = vst.msk [vmem:[%s7] sm:$0xff] %vm231, %v228
    // Predicated region
    $region38: #{forward.1} parent=1 // pred_check
      _
    $region39: #{forward.1} parent=1 // pred_check_branch
      %234 = sbr.rel (0) target = $region41
    $region40: #{forward.1} parent=1 // pred_region
      _
    $region41: #{forward.1} parent=1 // pred_fallthru
      _
    // Predicated region
    $region42: #{forward.1} parent=1 // pred_check
      _
    $region43: #{forward.1} parent=1 // pred_check_branch
      %236 = sbr.rel (0) target = $region45
    $region44: #{forward.1} parent=1 // pred_region
      _
    $region45: #{forward.1} parent=1 // pred_fallthru
      _
    %237 = vsyncpa [#allocation4], 1
    %238 = vsyncpa [#allocation6], 1

</llo_original>
